<compile_context>
chip_gen: v7x
topology: tpu7x:2x2x1
jax: 0.10.0
libtpu: 0.0.40
codegen_flags: <defaults>
</compile_context>

<pallas_src>
import math

import jax
import jax.numpy as jnp
from jax import lax
from jax.experimental import pallas as pl
from jax.experimental.pallas import tpu as pltpu


# ----------------------------------------------------------------------------
# Kernel 1: row-wise L2 normalization of an embedding table.
# Matches torch.nn.functional.normalize(x, p=2, dim=-1) -> x / max(||x||, 1e-12)
# which is equivalent to x * rsqrt(max(||x||^2, 1e-24)).
# ----------------------------------------------------------------------------
def _l2_normalize_kernel(x_ref, o_ref):
    x = x_ref[...].astype(jnp.float32)
    sq = jnp.sum(x * x, axis=-1, keepdims=True)          # (tile_rows, 1)
    inv = lax.rsqrt(jnp.maximum(sq, 1e-24))               # EUP slot, no f32 divide
    o_ref[...] = (x * inv).astype(o_ref.dtype)


def _pick_tile_rows(n, d, bytes_budget=8 << 20):
    # Double-buffered in + out tiles: ~ 4 * tile_rows * d * 4 bytes.
    # 8 MiB budget leaves headroom on every generation's scoped-VMEM default.
    # No divisibility requirement: the ragged last block is masked by Pallas.
    max_rows = max(8, bytes_budget // (16 * d))
    for t in (1024, 512, 256, 128, 64, 32, 16, 8):
        if t <= max_rows and t <= n:
            return t
    return n  # tiny table (n < 8): single full block


def l2_normalize_rows(emb):
    n, d = emb.shape
    tile_rows = _pick_tile_rows(n, d)
    return pl.pallas_call(
        _l2_normalize_kernel,
        out_shape=jax.ShapeDtypeStruct((n, d), emb.dtype),
        grid_spec=pltpu.PrefetchScalarGridSpec(
            num_scalar_prefetch=0,
            grid=(pl.cdiv(n, tile_rows),),
            in_specs=[pl.BlockSpec((tile_rows, d), lambda i: (i, 0))],
            out_specs=pl.BlockSpec((tile_rows, d), lambda i: (i, 0)),
        ),
        compiler_params=pltpu.CompilerParams(dimension_semantics=("parallel",)),
        input_output_aliases={0: 0},   # normalize the table in place (under jit)
    )(emb)


# ----------------------------------------------------------------------------
# Kernel 2: fused gather + TransE score:  score = -|| E[h] + R[r] - E[t] ||_2.
# One grid step per batch tile: all 3*tile_b row gathers are issued as manual
# DMAs (concurrently in flight on 3 shared DMA semaphores), then the whole
# tile is scored in one vectorized pass and written with one lane-dense store.
# ----------------------------------------------------------------------------
def fused_transe_score(ent_embs, rel_embs, h_idx, r_idx, t_idx, tile_b=128):
    n_ent, d = ent_embs.shape
    n_rel, d_r = rel_embs.shape
    assert d == d_r, "TransE scoring requires ent_emb_dim == rel_emb_dim"

    b = h_idx.shape[0]
    if b < tile_b:
        tile_b = max(8, ((b + 7) // 8) * 8)   # shrink for tiny batches
    num_tiles = pl.cdiv(b, tile_b)
    b_pad = num_tiles * tile_b
    pad = b_pad - b
    if pad:
        # pad with a valid row index (0) so gather DMAs never go out of bounds
        h_idx = jnp.pad(h_idx, (0, pad))
        r_idx = jnp.pad(r_idx, (0, pad))
        t_idx = jnp.pad(t_idx, (0, pad))

    def kernel(h_idx_ref, r_idx_ref, t_idx_ref,   # scalar-prefetch (SMEM)
               ent_ref, rel_ref,                  # raw HBM refs (pl.ANY)
               o_ref,                             # (tile_b,) lane-dense scores
               h_buf, r_buf, t_buf, sems):        # VMEM scratch + DMA sems
        i = pl.program_id(0)
        base = i * tile_b

        def issue(j, carry):
            h = h_idx_ref[base + j]
            r = r_idx_ref[base + j]
            t = t_idx_ref[base + j]
            pltpu.make_async_copy(ent_ref.at[pl.ds(h, 1)],
                                  h_buf.at[pl.ds(j, 1)], sems.at[0]).start()
            pltpu.make_async_copy(rel_ref.at[pl.ds(r, 1)],
                                  r_buf.at[pl.ds(j, 1)], sems.at[1]).start()
            pltpu.make_async_copy(ent_ref.at[pl.ds(t, 1)],
                                  t_buf.at[pl.ds(j, 1)], sems.at[2]).start()
            return carry

        # issue all 3*tile_b row gathers; they queue and overlap in the DMA engine
        lax.fori_loop(0, tile_b, issue, 0, unroll=8)

        # DMA semaphores count bytes: one wait per stream for the total bytes
        # of all tile_b row copies landing in that buffer.
        pltpu.make_async_copy(h_buf, h_buf, sems.at[0]).wait()
        pltpu.make_async_copy(r_buf, r_buf, sems.at[1]).wait()
        pltpu.make_async_copy(t_buf, t_buf, sems.at[2]).wait()

        diff = (h_buf[...].astype(jnp.float32)
                + r_buf[...].astype(jnp.float32)
                - t_buf[...].astype(jnp.float32))          # (tile_b, d)
        sq = jnp.sum(diff * diff, axis=-1)                  # (tile_b,)
        o_ref[...] = (-jnp.sqrt(sq)).astype(o_ref.dtype)    # one unmasked store

    out = pl.pallas_call(
        kernel,
        out_shape=jax.ShapeDtypeStruct((b_pad,), jnp.float32),
        grid_spec=pltpu.PrefetchScalarGridSpec(
            num_scalar_prefetch=3,
            grid=(num_tiles,),
            in_specs=[pl.BlockSpec(memory_space=pl.ANY),    # entity table (HBM)
                      pl.BlockSpec(memory_space=pl.ANY)],   # relation table (HBM)
            out_specs=pl.BlockSpec((tile_b,), lambda i, hh, rr, tt: (i,)),
            scratch_shapes=[
                pltpu.VMEM((tile_b, d), ent_embs.dtype),    # E[h] rows
                pltpu.VMEM((tile_b, d), rel_embs.dtype),    # R[r] rows
                pltpu.VMEM((tile_b, d), ent_embs.dtype),    # E[t] rows
                pltpu.SemaphoreType.DMA((3,)),
            ],
        ),
        compiler_params=pltpu.CompilerParams(
            dimension_semantics=("parallel",)),              # tiles -> 2 TCs on v7x
    )(h_idx, r_idx, t_idx, ent_embs, rel_embs)

    return out[:b]


# ----------------------------------------------------------------------------
# JAX-side "EmbeddingModel": parameter setup + forward glue.
# ----------------------------------------------------------------------------
class EmbeddingModel:
    def __init__(self, num_entities, num_relations, ent_emb_dim, rel_emb_dim,
                 weight_init="uniform", norm_constraint=True, key=None):
        assert ent_emb_dim == rel_emb_dim, \
            "TransE-style score_hrt requires ent_emb_dim == rel_emb_dim"
        self.num_entities = num_entities
        self.num_relations = num_relations
        self.ent_emb_dim = ent_emb_dim
        self.rel_emb_dim = rel_emb_dim
        self.weight_init = weight_init
        self.norm_constraint = norm_constraint

        # Pad the stored embedding dim up to one full 128-lane vreg row when the
        # logical dim is smaller: every gathered row becomes a full, lane-aligned
        # DMA and the zero pad is exact for both the L2 norm and ||h + r - t||.
        self._emb_dim_store = ent_emb_dim if ent_emb_dim >= 128 else 128

        key = jax.random.PRNGKey(0) if key is None else key
        k_ent, k_rel = jax.random.split(key)
        # TODO(synk): tables could be stored in bfloat16 (compute already upcasts
        # to f32 in-kernel) to halve HBM traffic on v6e/v7x; kept f32 to match
        # the torch reference exactly.
        self.ent_embs = self._init_emb(k_ent, num_entities, ent_emb_dim)
        self.rel_embs = self._init_emb(k_rel, num_relations, rel_emb_dim)

        # The entity table only needs re-normalization after it actually changes
        # (e.g. a training step). Re-normalizing an already-unit-norm table is a
        # numerical no-op, so forward() skips the full-table HBM pass via this
        # flag. Reset it to False whenever ent_embs is updated.
        self._ent_normalized = False

    def _init_emb(self, key, n, d):
        # xavier_uniform_ / xavier_normal_ on an (n, d) embedding weight
        if self.weight_init == "uniform":
            bound = math.sqrt(6.0 / (n + d))
            w = jax.random.uniform(key, (n, d), jnp.float32, -bound, bound)
        elif self.weight_init == "normal":
            std = math.sqrt(2.0 / (n + d))
            w = std * jax.random.normal(key, (n, d), jnp.float32)
        else:
            raise ValueError(self.weight_init)
        if self._emb_dim_store > d:
            w = jnp.pad(w, ((0, 0), (0, self._emb_dim_store - d)))
        return w

    def _normalize_entities(self, p):
        assert p == 2  # forward() always calls with p=2
        if not self._ent_normalized:
            self.ent_embs = l2_normalize_rows(self.ent_embs)
            self._ent_normalized = True

    def score_hrt(self, triplets, negative_ents=None):
        if negative_ents is not None:
            # TODO(synk): negative_ents scoring is model-specific (abstract in base class).
            raise NotImplementedError("negative_ents scoring not implemented")
        h_idx = triplets[:, 0].astype(jnp.int32)
        r_idx = triplets[:, 1].astype(jnp.int32)
        t_idx = triplets[:, 2].astype(jnp.int32)
        return fused_transe_score(self.ent_embs, self.rel_embs, h_idx, r_idx, t_idx)

    def forward(self, triplets, mode=None, negative_ents=None):
        if self.norm_constraint:
            self._normalize_entities(2)
        if mode is None:
            scores = self.score_hrt(triplets, negative_ents=negative_ents)
        elif mode == "head":
            # TODO(synk): score_head against all entities is abstract in the base class.
            raise NotImplementedError("score_head not implemented")
        elif mode == "tail":
            # TODO(synk): score_tail against all entities is abstract in the base class.
            raise NotImplementedError("score_tail not implemented")
        else:
            raise ValueError("Invalid value for `mode`.")
        return scores


if __name__ == "__main__":
    num_entities = 64
    num_relations = 16
    emb_dim = 32
    batch = 8

    model = EmbeddingModel(num_entities, num_relations, emb_dim, emb_dim,
                           weight_init="uniform", norm_constraint=True,
                           key=jax.random.PRNGKey(0))

    key = jax.random.PRNGKey(0)
    kh, kr, kt = jax.random.split(key, 3)
    heads = jax.random.randint(kh, (batch,), 0, num_entities, dtype=jnp.int32)
    rels = jax.random.randint(kr, (batch,), 0, num_relations, dtype=jnp.int32)
    tails = jax.random.randint(kt, (batch,), 0, num_entities, dtype=jnp.int32)
    triplets = jnp.stack([heads, rels, tails], axis=1)   # (B, 3) int32

    scores = model.forward(triplets, mode=None)
    scores = jax.block_until_ready(scores)

    # sanity check vs. pure-JAX reference (uses the kernel-normalized table)
    ent_n = model.ent_embs
    h = jnp.take(ent_n, triplets[:, 0], axis=0)
    r = jnp.take(model.rel_embs, triplets[:, 1], axis=0)
    t = jnp.take(ent_n, triplets[:, 2], axis=0)
    ref = -jnp.sqrt(jnp.sum((h + r - t) ** 2, axis=-1))
    assert scores.shape == (batch,)
    assert jnp.allclose(scores, ref, atol=1e-5), (scores, ref)

    # normalized rows should have unit L2 norm (zero pad lanes don't affect it)
    norms = jnp.linalg.norm(model.ent_embs, axis=-1)
    assert jnp.allclose(norms, 1.0, atol=1e-3), norms

    # a second forward skips the full-table normalize and must give identical scores
    scores2 = jax.block_until_ready(model.forward(triplets, mode=None))
    assert jnp.allclose(scores, scores2, atol=1e-6)

    print("KERNEL_OK")
</pallas_src>

<mosaic_0001>
module attributes {stable_mosaic.version = 11 : i64} {
  func.func @_l2_normalize_kernel(%arg0: i32, %arg1: memref<64x128xf32, #tpu.memory_space<vmem>>, %arg2: memref<64x128xf32, #tpu.memory_space<vmem>>) attributes {dimension_semantics = [#tpu.dimension_semantics<parallel>], iteration_bounds = array<i64: 1>, scalar_prefetch = 0 : i64, scratch_operands = 0 : i64, tpu.core_type = #tpu.core_type<tc>, window_params = [{transform_indices = @transform_0, window_bounds = array<i64: 64, 128>}, {transform_indices = @transform_1, window_bounds = array<i64: 64, 128>}]} {
    %c0 = arith.constant 0 : index
    %c0_0 = arith.constant 0 : index
    %0 = vector.load %arg1[%c0, %c0_0] : memref<64x128xf32, #tpu.memory_space<vmem>>, vector<64x128xf32>
    %1 = arith.mulf %0, %0 : vector<64x128xf32>
    %cst = arith.constant dense<0.000000e+00> : vector<64xf32>
    %2 = vector.multi_reduction <add>, %1, %cst [1] : vector<64x128xf32> to vector<64xf32>
    %3 = vector.shape_cast %2 : vector<64xf32> to vector<64x1xf32>
    %cst_1 = arith.constant 1.000000e-24 : f32
    %4 = vector.broadcast %cst_1 : f32 to vector<64x1xf32>
    %5 = arith.maximumf %3, %4 : vector<64x1xf32>
    %6 = math.rsqrt %5 : vector<64x1xf32>
    %7 = vector.broadcast %6 : vector<64x1xf32> to vector<64x128xf32>
    %8 = arith.mulf %0, %7 : vector<64x128xf32>
    %c0_2 = arith.constant 0 : index
    %c0_3 = arith.constant 0 : index
    %9 = vector.load %arg2[%c0_2, %c0_3] : memref<64x128xf32, #tpu.memory_space<vmem>>, vector<64x128xf32>
    tpu.vector_store %arg2[%c0_2, %c0_3], %8 {strides = array<i32>} : memref<64x128xf32, #tpu.memory_space<vmem>>, vector<64x128xf32>,
    return
  }
  func.func @transform_0(%arg0: i32) -> (i32, i32) {
    %c0_i32 = arith.constant 0 : i32
    %c0_i32_0 = arith.constant 0 : i32
    return %arg0, %c0_i32 : i32, i32
  }
  func.func @transform_1(%arg0: i32) -> (i32, i32) {
    %c0_i32 = arith.constant 0 : i32
    %c0_i32_0 = arith.constant 0 : i32
    return %arg0, %c0_i32 : i32, i32
  }
}

</mosaic_0001>

<llo_original>
// kernel: tpu_custom_call.1
$region0: #{tpu_custom_call.1}
  #allocation0 [shape = 'u32[]', space=smem, size = 0x4, offset = 0x4, fixed_abs, tag = 'smem constant byte address 0x4 - core index']
  #allocation1 [shape = 'u32[144,128]{1,0:T(1,128)}', space=vmem, size = 0x12000, scoped, tag = 'internal scratch']
  %s0 = inlined_call_operand.hbm [shape: f32[64,128], index: 0, kind: input, shape index: {}, may-alias: {0,1}]
  %s1 = inlined_call_operand.hbm [shape: f32[64,128], index: 1, kind: output, shape index: {}, may-alias: {0,1}]
  %s2 = sld [smem:[#allocation0]]
  $region18: #{tpu_custom_call.1} parent=0
    _
  %s4 = ssub.s32 1, %s2
  %s5 = scalar_select 0, %s4, %s2
  $region1: #{tpu_custom_call.1} parent=0
    #allocation2 [shape = 'u8[32768]{0}', space=vmem, size = 0x8000, scoped, tag = 'input window, operand 0, single buffered']
    #allocation3 [shape = 's32[1]{0}', space=sflag, size = 0x4, scoped, tag = 'scoped memory for tpu_custom_call.1']
    #allocation4 [shape = 's32[1]{0}', space=sflag, size = 0x4, scoped, tag = 'scoped memory for tpu_custom_call.1']
    #allocation5 [shape = 'u8[32768]{0}', space=vmem, size = 0x8000, scoped, tag = 'output window, operand 0, single buffered']
    %6 = vsyncpa [#allocation3], 0
    %7 = vsyncpa [#allocation4], 0
    // Predicated region
    $region2: #{tpu_custom_call.1} parent=1 // pred_check
      _
    $region3: #{tpu_custom_call.1} parent=1 // pred_check_branch
      %9 = sbr.rel (0) target = $region5
    $region4: #{tpu_custom_call.1} parent=1 // pred_region
      %s11 = ssub.s32 1024, 1024
      %12 = vsyncadd [#allocation3], %s11
      %s13 = sshll.u32 [#allocation2], 4
      %s14 = int_to_ptr.vmem [resolvable:$true] %s13
      %19 = dma.hbm_to_vmem [thread:$0]  %s0, 1024, %s14, [#allocation3], 128, 128, 8
    $region5: #{tpu_custom_call.1} parent=1 // pred_fallthru
      _
    // Predicated region
    $region6: #{tpu_custom_call.1} parent=1 // pred_check
      _
    $region7: #{tpu_custom_call.1} parent=1 // pred_check_branch
      %21 = sbr.rel (0) target = $region9
    $region8: #{tpu_custom_call.1} parent=1 // pred_region
      %22 = dma.done [#allocation3], 1024
    $region9: #{tpu_custom_call.1} parent=1 // pred_fallthru
      _
    %v23 = vld [vmem:[#allocation2] sm:$0xff]
    %v24 = vld [vmem:[#allocation2 + $0x8] sm:$0xff]
    %v25 = vld [vmem:[#allocation2 + $0x10] sm:$0xff]
    %v26 = vld [vmem:[#allocation2 + $0x18] sm:$0xff]
    %v27 = vld [vmem:[#allocation2 + $0x20] sm:$0xff]
    %v28 = vld [vmem:[#allocation2 + $0x28] sm:$0xff]
    %v29 = vld [vmem:[#allocation2 + $0x30] sm:$0xff]
    %v30 = vld [vmem:[#allocation2 + $0x38] sm:$0xff]
    %v31 = vmul.f32 %v23, %v23
    %v32 = vmul.f32 %v24, %v24
    %v33 = vmul.f32 %v25, %v25
    %v34 = vmul.f32 %v26, %v26
    %v35 = vmul.f32 %v27, %v27
    %v36 = vmul.f32 %v28, %v28
    %v37 = vmul.f32 %v29, %v29
    %v38 = vmul.f32 %v30, %v30
    %39 = vadd.xlane.f32.xlu0 %v31
    %v40 = vpop.xlane.xlu0 %39
    %41 = vadd.xlane.f32.xlu0 %v32
    %v42 = vpop.xlane.xlu0 %41
    %43 = vadd.xlane.f32.xlu0 %v33
    %v44 = vpop.xlane.xlu0 %43
    %45 = vadd.xlane.f32.xlu0 %v34
    %v46 = vpop.xlane.xlu0 %45
    %47 = vadd.xlane.f32.xlu0 %v35
    %v48 = vpop.xlane.xlu0 %47
    %49 = vadd.xlane.f32.xlu0 %v36
    %v50 = vpop.xlane.xlu0 %49
    %51 = vadd.xlane.f32.xlu0 %v37
    %v52 = vpop.xlane.xlu0 %51
    %53 = vadd.xlane.f32.xlu0 %v38
    %v54 = vpop.xlane.xlu0 %53
    %v55 = vmax.f32 %v40, 1e-24
    %v56 = vmax.f32 %v42, 1e-24
    %v57 = vmax.f32 %v44, 1e-24
    %v58 = vmax.f32 %v46, 1e-24
    %v59 = vmax.f32 %v48, 1e-24
    %v60 = vmax.f32 %v50, 1e-24
    %v61 = vmax.f32 %v52, 1e-24
    %v62 = vmax.f32 %v54, 1e-24
    %v63 = vrsqrt.pop %v55
    %v64 = vrsqrt.pop %v56
    %v65 = vrsqrt.pop %v57
    %v66 = vrsqrt.pop %v58
    %v67 = vrsqrt.pop %v59
    %v68 = vrsqrt.pop %v60
    %v69 = vrsqrt.pop %v61
    %v70 = vrsqrt.pop %v62
    %v71 = vmul.f32 %v23, %v63
    %v72 = vmul.f32 %v24, %v64
    %v73 = vmul.f32 %v25, %v65
    %v74 = vmul.f32 %v26, %v66
    %v75 = vmul.f32 %v27, %v67
    %v76 = vmul.f32 %v28, %v68
    %v77 = vmul.f32 %v29, %v69
    %v78 = vmul.f32 %v30, %v70
    %79 = vst [vmem:[#allocation5] sm:$0xff] %v71
    %80 = vst [vmem:[#allocation5 + $0x8] sm:$0xff] %v72
    %81 = vst [vmem:[#allocation5 + $0x10] sm:$0xff] %v73
    %82 = vst [vmem:[#allocation5 + $0x18] sm:$0xff] %v74
    %83 = vst [vmem:[#allocation5 + $0x20] sm:$0xff] %v75
    %84 = vst [vmem:[#allocation5 + $0x28] sm:$0xff] %v76
    %85 = vst [vmem:[#allocation5 + $0x30] sm:$0xff] %v77
    %86 = vst [vmem:[#allocation5 + $0x38] sm:$0xff] %v78
    // Predicated region
    $region10: #{tpu_custom_call.1} parent=1 // pred_check
      _
    $region11: #{tpu_custom_call.1} parent=1 // pred_check_branch
      %88 = sbr.rel (0) target = $region13
    $region12: #{tpu_custom_call.1} parent=1 // pred_region
      %s90 = ssub.s32 1024, 1024
      %91 = vsyncadd [#allocation4], %s90
      %s92 = sshll.u32 [#allocation5], 4
      %s93 = int_to_ptr.vmem [resolvable:$true] %s92
      %98 = dma.vmem_to_hbm [thread:$0]  %s93, 1024, %s1, [#allocation4], 128, 128, 8
    $region13: #{tpu_custom_call.1} parent=1 // pred_fallthru
      _
    // Predicated region
    $region14: #{tpu_custom_call.1} parent=1 // pred_check
      _
    $region15: #{tpu_custom_call.1} parent=1 // pred_check_branch
      %100 = sbr.rel (0) target = $region17
    $region16: #{tpu_custom_call.1} parent=1 // pred_region
      %101 = dma.done [#allocation4], 1024
    $region17: #{tpu_custom_call.1} parent=1 // pred_fallthru
      _
    %102 = vsyncpa [#allocation3], 1
    %103 = vsyncpa [#allocation4], 1

</llo_original>
